<compile_context>
chip_gen: v5e
topology: v5e:2x2
jax: 0.10.0
libtpu: 0.0.40
codegen_flags: <defaults>
</compile_context>

<pallas_src>
import jax
import jax.numpy as jnp
from jax.experimental import pallas as pl
from jax.experimental.pallas import tpu as pltpu


def _round_up(x: int, m: int) -> int:
    return ((x + m - 1) // m) * m


def _tied_linear_kernel(x_ref, w_ref, b_ref, o_ref, acc_ref):
    k = pl.program_id(2)

    @pl.when(k == 0)
    def _init():
        # Seed the accumulator with the bias (broadcast over rows) so the
        # epilogue is just a cast — no separate zero-init + bias add.
        bias = b_ref[...].astype(jnp.float32)            # (1, tn)
        acc_ref[...] = jnp.broadcast_to(bias, acc_ref.shape)

    # MXU matmul with f32 accumulation.
    acc_ref[...] += jnp.dot(
        x_ref[...], w_ref[...], preferred_element_type=jnp.float32
    )

    @pl.when(k == pl.num_programs(2) - 1)
    def _finalize():
        o_ref[...] = acc_ref[...].astype(o_ref.dtype)


def weight_tied_linear(x, w_tie, bias, *, tm=256, tn=512, tk=512):
    """y = x @ w_tie + bias.

    x:      (B, out_tie)
    w_tie:  (out_tie, in_tie)   == tie_to_linear.weight
    bias:   (in_tie,)
    """
    B, K = x.shape
    Kw, N = w_tie.shape
    assert K == Kw, (K, Kw)
    assert bias.shape == (N,), bias.shape

    out_dtype = x.dtype

    # Clamp tiles to the (aligned) problem size:
    #   tm: multiple of 8 (sublanes), tn / tk: multiples of 128 (lanes).
    tm = min(tm, _round_up(B, 8))
    tn = min(tn, _round_up(N, 128))
    tk = min(tk, _round_up(K, 128))

    Mp = _round_up(B, tm)
    Kp = _round_up(K, tk)
    Np = _round_up(N, tn)

    # Zero-pad: padded K columns contribute 0, padded N columns sliced off.
    x_p = jnp.pad(x, ((0, Mp - B), (0, Kp - K))) if (Mp, Kp) != (B, K) else x
    w_p = (
        jnp.pad(w_tie, ((0, Kp - K), (0, Np - N)))
        if (Kp, Np) != (K, N)
        else w_tie
    )
    b_p = (jnp.pad(bias, (0, Np - N)) if Np != N else bias).reshape(1, Np)

    grid = (Mp // tm, Np // tn, Kp // tk)

    bytes_per = jnp.dtype(out_dtype).itemsize
    cost = pl.CostEstimate(
        flops=2 * Mp * Kp * Np,
        transcendentals=0,
        bytes_accessed=bytes_per * (Mp * Kp + Kp * Np + Mp * Np)
        + jnp.dtype(bias.dtype).itemsize * Np,
    )

    y_p = pl.pallas_call(
        _tied_linear_kernel,
        out_shape=jax.ShapeDtypeStruct((Mp, Np), out_dtype),
        grid_spec=pltpu.PrefetchScalarGridSpec(
            num_scalar_prefetch=0,
            grid=grid,
            in_specs=[
                pl.BlockSpec((tm, tk), lambda i, j, k: (i, k)),   # x tile
                pl.BlockSpec((tk, tn), lambda i, j, k: (k, j)),   # W tile
                pl.BlockSpec((1, tn), lambda i, j, k: (0, j)),    # bias tile
            ],
            out_specs=pl.BlockSpec((tm, tn), lambda i, j, k: (i, j)),
            scratch_shapes=[pltpu.VMEM((tm, tn), jnp.float32)],
        ),
        compiler_params=pltpu.CompilerParams(
            dimension_semantics=("parallel", "parallel", "arbitrary"),
            vmem_limit_bytes=32 * 1024 * 1024,  # safe on v5e/v6e/v7x at these tiles
        ),
        cost_estimate=cost,
    )(x_p, w_p, b_p)

    if (Mp, Np) != (B, N):
        y_p = y_p[:B, :N]
    return y_p


if __name__ == "__main__":
    key = jax.random.PRNGKey(0)

    # --- 1) Shapes consistent with the module demo ---------------------------
    #   tie_to_linear = nn.Linear(in_tie=16, out_tie=32) -> W: (32, 16)
    #   src_linear    = nn.Linear(32, 16)                -> bias: (16,)
    #   WeightTiedLinear maps 32 -> 16 features.
    batch, out_tie, in_tie = 8, 32, 16
    kx, kw, kb, kx2, kw2, kb2, kx3, kw3, kb3 = jax.random.split(key, 9)

    x = jax.random.normal(kx, (batch, out_tie), dtype=jnp.float32)
    w_tie = jax.random.normal(kw, (out_tie, in_tie), dtype=jnp.float32) * 0.1
    bias = jax.random.normal(kb, (in_tie,), dtype=jnp.float32) * 0.1

    y = jax.block_until_ready(weight_tied_linear(x, w_tie, bias))
    y_ref = x @ w_tie + bias
    assert y.shape == (batch, in_tie)
    assert jnp.allclose(y, y_ref, atol=1e-5, rtol=1e-5)

    # --- 2) Larger aligned shape exercising a multi-tile (M, N, K) grid ------
    B2, K2, N2 = 512, 1024, 512
    x2 = jax.random.normal(kx2, (B2, K2), dtype=jnp.float32)
    w2 = jax.random.normal(kw2, (K2, N2), dtype=jnp.float32) * 0.05
    b2 = jax.random.normal(kb2, (N2,), dtype=jnp.float32) * 0.05

    y2 = jax.block_until_ready(weight_tied_linear(x2, w2, b2))
    y2_ref = x2 @ w2 + b2
    assert y2.shape == (B2, N2)
    assert jnp.allclose(y2, y2_ref, atol=1e-4, rtol=1e-4)

    # --- 3) Non-aligned shape exercising the padding path --------------------
    B3, K3, N3 = 100, 72, 50
    x3 = jax.random.normal(kx3, (B3, K3), dtype=jnp.float32)
    w3 = jax.random.normal(kw3, (K3, N3), dtype=jnp.float32) * 0.1
    b3 = jax.random.normal(kb3, (N3,), dtype=jnp.float32) * 0.1

    y3 = jax.block_until_ready(weight_tied_linear(x3, w3, b3))
    y3_ref = x3 @ w3 + b3
    assert y3.shape == (B3, N3)
    assert jnp.allclose(y3, y3_ref, atol=1e-5, rtol=1e-5)

    print("KERNEL_OK")
</pallas_src>

<mosaic_0001>
module attributes {stable_mosaic.version = 11 : i64} {
  func.func @_tied_linear_kernel(%arg0: i32, %arg1: i32, %arg2: i32, %arg3: memref<8x128xf32, #tpu.memory_space<vmem>>, %arg4: memref<128x128xf32, #tpu.memory_space<vmem>>, %arg5: memref<1x128xf32, #tpu.memory_space<vmem>>, %arg6: memref<8x128xf32, #tpu.memory_space<vmem>>, %arg7: memref<8x128xf32, #tpu.memory_space<vmem>>) attributes {dimension_semantics = [#tpu.dimension_semantics<parallel>, #tpu.dimension_semantics<parallel>, #tpu.dimension_semantics<arbitrary>], iteration_bounds = array<i64: 1, 1, 1>, scalar_prefetch = 0 : i64, scratch_operands = 1 : i64, tpu.core_type = #tpu.core_type<tc>, window_params = [{transform_indices = @transform_0, window_bounds = array<i64: 8, 128>}, {transform_indices = @transform_1, window_bounds = array<i64: 128, 128>}, {transform_indices = @transform_2, window_bounds = array<i64: 1, 128>}, {transform_indices = @transform_3, window_bounds = array<i64: 8, 128>}]} {
    %c0_i32 = arith.constant 0 : i32
    %0 = arith.cmpi eq, %arg2, %c0_i32 : i32
    %1 = arith.extui %0 : i1 to i32
    %c0_i32_0 = arith.constant 0 : i32
    %2 = arith.cmpi ne, %1, %c0_i32_0 : i32
    scf.if %2 {
      %c0_10 = arith.constant 0 : index
      %c0_11 = arith.constant 0 : index
      %12 = vector.load %arg5[%c0_10, %c0_11] : memref<1x128xf32, #tpu.memory_space<vmem>>, vector<1x128xf32>
      %13 = vector.shape_cast %12 : vector<1x128xf32> to vector<1x128xf32>
      %14 = vector.broadcast %13 : vector<1x128xf32> to vector<8x128xf32>
      %c0_12 = arith.constant 0 : index
      %c0_13 = arith.constant 0 : index
      %15 = vector.load %arg7[%c0_12, %c0_13] : memref<8x128xf32, #tpu.memory_space<vmem>>, vector<8x128xf32>
      tpu.vector_store %arg7[%c0_12, %c0_13], %14 {strides = array<i32>} : memref<8x128xf32, #tpu.memory_space<vmem>>, vector<8x128xf32>,
    } else {
    }
    %c0 = arith.constant 0 : index
    %c0_1 = arith.constant 0 : index
    %3 = vector.load %arg7[%c0, %c0_1] : memref<8x128xf32, #tpu.memory_space<vmem>>, vector<8x128xf32>
    %c0_2 = arith.constant 0 : index
    %c0_3 = arith.constant 0 : index
    %4 = vector.load %arg3[%c0_2, %c0_3] : memref<8x128xf32, #tpu.memory_space<vmem>>, vector<8x128xf32>
    %c0_4 = arith.constant 0 : index
    %c0_5 = arith.constant 0 : index
    %5 = vector.load %arg4[%c0_4, %c0_5] : memref<128x128xf32, #tpu.memory_space<vmem>>, vector<128x128xf32>
    %cst = arith.constant dense<0.000000e+00> : vector<8x128xf32>
    %6 = tpu.matmul %4, %5, %cst {dimension_numbers = #tpu.dot_dimension_numbers<[1], [0], [0], [1], [0, 0, 1, 1], [], []>} : vector<8x128xf32>, vector<128x128xf32>, vector<8x128xf32> -> vector<8x128xf32>
    %7 = arith.addf %3, %6 : vector<8x128xf32>
    %c0_6 = arith.constant 0 : index
    %c0_7 = arith.constant 0 : index
    %8 = vector.load %arg7[%c0_6, %c0_7] : memref<8x128xf32, #tpu.memory_space<vmem>>, vector<8x128xf32>
    tpu.vector_store %arg7[%c0_6, %c0_7], %7 {strides = array<i32>} : memref<8x128xf32, #tpu.memory_space<vmem>>, vector<8x128xf32>,
    %c0_i32_8 = arith.constant 0 : i32
    %9 = arith.cmpi eq, %arg2, %c0_i32_8 : i32
    %10 = arith.extui %9 : i1 to i32
    %c0_i32_9 = arith.constant 0 : i32
    %11 = arith.cmpi ne, %10, %c0_i32_9 : i32
    scf.if %11 {
      %c0_10 = arith.constant 0 : index
      %c0_11 = arith.constant 0 : index
      %12 = vector.load %arg7[%c0_10, %c0_11] : memref<8x128xf32, #tpu.memory_space<vmem>>, vector<8x128xf32>
      %c0_12 = arith.constant 0 : index
      %c0_13 = arith.constant 0 : index
      %13 = vector.load %arg6[%c0_12, %c0_13] : memref<8x128xf32, #tpu.memory_space<vmem>>, vector<8x128xf32>
      tpu.vector_store %arg6[%c0_12, %c0_13], %12 {strides = array<i32>} : memref<8x128xf32, #tpu.memory_space<vmem>>, vector<8x128xf32>,
    } else {
    }
    return
  }
  func.func @transform_0(%arg0: i32, %arg1: i32, %arg2: i32) -> (i32, i32) {
    %c0_i32 = arith.constant 0 : i32
    return %arg0, %arg2 : i32, i32
  }
  func.func @transform_1(%arg0: i32, %arg1: i32, %arg2: i32) -> (i32, i32) {
    %c0_i32 = arith.constant 0 : i32
    return %arg2, %arg1 : i32, i32
  }
  func.func @transform_2(%arg0: i32, %arg1: i32, %arg2: i32) -> (i32, i32) {
    %c0_i32 = arith.constant 0 : i32
    %c0_i32_0 = arith.constant 0 : i32
    return %c0_i32, %arg1 : i32, i32
  }
  func.func @transform_3(%arg0: i32, %arg1: i32, %arg2: i32) -> (i32, i32) {
    %c0_i32 = arith.constant 0 : i32
    return %arg0, %arg1 : i32, i32
  }
}

</mosaic_0001>

<llo_original>
// kernel: tpu_custom_call.1
$region0: #{tpu_custom_call.1}
  #allocation0 [shape = 'u32[]', space=smem, size = 0x4, offset = 0x4, fixed_abs, tag = 'smem constant byte address 0x4 - core index']
  #allocation1 [shape = 'u32[72,128]{1,0:T(1,128)}', space=vmem, size = 0x9000, scoped, tag = 'internal scratch']
  #allocation2 [shape = 'f32[8,128]{1,0:T(8,128)}', space=vmem, size = 0x1000, scoped, tag = 'scratch operand']
  %s0 = inlined_call_operand.hbm [shape: f32[8,128], index: 0, kind: input, shape index: {}]
  %s1 = inlined_call_operand.hbm [shape: f32[128,128], index: 1, kind: input, shape index: {}]
  %s2 = inlined_call_operand.vmem [shape: f32[1,128], index: 2, kind: input, shape index: {}]
  %s3 = inlined_call_operand.hbm [shape: f32[8,128], index: 3, kind: output, shape index: {}]
  %s4 = sld [smem:[#allocation0]]
  $region38: #{tpu_custom_call.1} parent=0
    _
  %s6 = ssub.s32 1, %s4
  %s7 = scalar_select 0, %s6, %s4
  $region1: #{tpu_custom_call.1} parent=0
    #allocation3 [shape = 'u8[4096]{0}', space=vmem, size = 0x1000, scoped, tag = 'input window, operand 0, single buffered']
    #allocation4 [shape = 's32[1]{0}', space=sflag, size = 0x4, scoped, tag = 'scoped memory for tpu_custom_call.1']
    #allocation5 [shape = 's32[1]{0}', space=sflag, size = 0x4, scoped, tag = 'scoped memory for tpu_custom_call.1']
    #allocation6 [shape = 'u8[65536]{0}', space=vmem, size = 0x10000, scoped, tag = 'input window, operand 1, single buffered']
    #allocation7 [shape = 's32[1]{0}', space=sflag, size = 0x4, scoped, tag = 'scoped memory for tpu_custom_call.1']
    #allocation8 [shape = 'u8[4096]{0}', space=vmem, size = 0x1000, scoped, tag = 'output window, operand 0, single buffered']
    %8 = vsyncpa [#allocation4], 0
    %9 = vsyncpa [#allocation7], 0
    %10 = vsyncpa [#allocation5], 0
    // Predicated region
    $region2: #{tpu_custom_call.1} parent=1 // pred_check
      _
    $region3: #{tpu_custom_call.1} parent=1 // pred_check_branch
      %12 = sbr.rel (0) target = $region5
    $region4: #{tpu_custom_call.1} parent=1 // pred_region
      %14 = vsyncadd [#allocation4], 0
      %s16 = sshll.u32 %s0, 4
      %s17 = int_to_ptr.hbm [resolvable:$true] %s16
      %s18 = sshll.u32 [#allocation3], 4
      %s19 = int_to_ptr.vmem [resolvable:$true] %s18
      %21 = dma.hbm_to_vmem [thread:$0]  %s17, 128, %s19, [#allocation4]
    $region5: #{tpu_custom_call.1} parent=1 // pred_fallthru
      _
    // Predicated region
    $region6: #{tpu_custom_call.1} parent=1 // pred_check
      _
    $region7: #{tpu_custom_call.1} parent=1 // pred_check_branch
      %23 = sbr.rel (0) target = $region9
    $region8: #{tpu_custom_call.1} parent=1 // pred_region
      %25 = vsyncadd [#allocation7], 0
      %s26 = sshll.u32 %s1, 4
      %s27 = int_to_ptr.hbm [resolvable:$true] %s26
      %s28 = sshll.u32 [#allocation6], 4
      %s29 = int_to_ptr.vmem [resolvable:$true] %s28
      %34 = dma.hbm_to_vmem [thread:$0]  %s27, 2048, %s29, [#allocation7], 128, 128, 8
    $region9: #{tpu_custom_call.1} parent=1 // pred_fallthru
      _
    // Predicated region
    $region10: #{tpu_custom_call.1} parent=1 // pred_check
      _
    $region11: #{tpu_custom_call.1} parent=1 // pred_check_branch
      %36 = sbr.rel (0) target = $region13
    $region12: #{tpu_custom_call.1} parent=1 // pred_region
      _
    $region13: #{tpu_custom_call.1} parent=1 // pred_fallthru
      _
    // Predicated region
    $region14: #{tpu_custom_call.1} parent=1 // pred_check
      _
    $region15: #{tpu_custom_call.1} parent=1 // pred_check_branch
      %38 = sbr.rel (0) target = $region17
    $region16: #{tpu_custom_call.1} parent=1 // pred_region
      %40 = dma.done [#allocation4], 128
    $region17: #{tpu_custom_call.1} parent=1 // pred_fallthru
      _
    // Predicated region
    $region18: #{tpu_custom_call.1} parent=1 // pred_check
      _
    $region19: #{tpu_custom_call.1} parent=1 // pred_check_branch
      %42 = sbr.rel (0) target = $region21
    $region20: #{tpu_custom_call.1} parent=1 // pred_region
      %44 = dma.done [#allocation7], 2048
    $region21: #{tpu_custom_call.1} parent=1 // pred_fallthru
      _
    %p45 = scmp.eq.s32.totalorder 0, 0
    // Predicated region
    $region22: #{tpu_custom_call.1} parent=1 // pred_check
      %p46 = pneg %p45
    $region23: #{tpu_custom_call.1} parent=1 // pred_check_branch
      %48 = sbr.rel (%p46) target = $region25
    $region24: #{tpu_custom_call.1} parent=1 // pred_region
      %v49 = vld [vmem:[%s2] sm:$0x1]
      %v51 = vperm.slane %v49, 0
      %53 = vst [vmem:[#allocation2] sm:$0xff] %v51
    $region25: #{tpu_custom_call.1} parent=1 // pred_fallthru
      _
    %v54 = vld [vmem:[#allocation2] sm:$0xff]
    %v55 = vld [vmem:[#allocation3] sm:$0xff]
    %v56 = vld [vmem:[#allocation6] sm:$0xff]
    %v57 = vld [vmem:[#allocation6 + $0x8] sm:$0xff]
    %v58 = vld [vmem:[#allocation6 + $0x10] sm:$0xff]
    %v59 = vld [vmem:[#allocation6 + $0x18] sm:$0xff]
    %v60 = vld [vmem:[#allocation6 + $0x20] sm:$0xff]
    %v61 = vld [vmem:[#allocation6 + $0x28] sm:$0xff]
    %v62 = vld [vmem:[#allocation6 + $0x30] sm:$0xff]
    %v63 = vld [vmem:[#allocation6 + $0x38] sm:$0xff]
    %v64 = vld [vmem:[#allocation6 + $0x40] sm:$0xff]
    %v65 = vld [vmem:[#allocation6 + $0x48] sm:$0xff]
    %v66 = vld [vmem:[#allocation6 + $0x50] sm:$0xff]
    %v67 = vld [vmem:[#allocation6 + $0x58] sm:$0xff]
    %v68 = vld [vmem:[#allocation6 + $0x60] sm:$0xff]
    %v69 = vld [vmem:[#allocation6 + $0x68] sm:$0xff]
    %v70 = vld [vmem:[#allocation6 + $0x70] sm:$0xff]
    %v71 = vld [vmem:[#allocation6 + $0x78] sm:$0xff]
    %72 = vmatpush.msra.mxu0 %v71
    %73 = vmatpush.msra.mxu0 %v70
    %74 = vmatpush.msra.mxu0 %v69
    %75 = vmatpush.msra.mxu0 %v68
    %76 = vmatpush.msra.mxu0 %v67
    %77 = vmatpush.msra.mxu0 %v66
    %78 = vmatpush.msra.mxu0 %v65
    %79 = vmatpush.msra.mxu0 %v64
    %80 = vmatpush.msra.mxu0 %v63
    %81 = vmatpush.msra.mxu0 %v62
    %82 = vmatpush.msra.mxu0 %v61
    %83 = vmatpush.msra.mxu0 %v60
    %84 = vmatpush.msra.mxu0 %v59
    %85 = vmatpush.msra.mxu0 %v58
    %86 = vmatpush.msra.mxu0 %v57
    %87 = vmatpush.msra.mxu0 %v56
    %88 = vmatmul.f32.gmra.mxu0 %v55
    %v89 = vpop.f32.mrf.mxu0
    %v90 = vadd.f32 0.0, %v89
    %91 = vdwg.mxu0
    %v92 = vadd.f32 %v54, %v90
    %93 = vst [vmem:[#allocation2] sm:$0xff] %v92
    // Predicated region
    $region26: #{tpu_custom_call.1} parent=1 // pred_check
      %p94 = pneg %p45
    $region27: #{tpu_custom_call.1} parent=1 // pred_check_branch
      %96 = sbr.rel (%p94) target = $region29
    $region28: #{tpu_custom_call.1} parent=1 // pred_region
      %v97 = vld [vmem:[#allocation2] sm:$0xff]
      %98 = vst [vmem:[#allocation8] sm:$0xff] %v97
    $region29: #{tpu_custom_call.1} parent=1 // pred_fallthru
      _
    // Predicated region
    $region30: #{tpu_custom_call.1} parent=1 // pred_check
      _
    $region31: #{tpu_custom_call.1} parent=1 // pred_check_branch
      %100 = sbr.rel (0) target = $region33
    $region32: #{tpu_custom_call.1} parent=1 // pred_region
      %102 = vsyncadd [#allocation5], 0
      %s104 = sshll.u32 [#allocation8], 4
      %s105 = int_to_ptr.vmem [resolvable:$true] %s104
      %s106 = sshll.u32 %s3, 4
      %s107 = int_to_ptr.hbm [resolvable:$true] %s106
      %109 = dma.vmem_to_hbm [thread:$0]  %s105, 128, %s107, [#allocation5]
    $region33: #{tpu_custom_call.1} parent=1 // pred_fallthru
      _
    // Predicated region
    $region34: #{tpu_custom_call.1} parent=1 // pred_check
      _
    $region35: #{tpu_custom_call.1} parent=1 // pred_check_branch
      %111 = sbr.rel (0) target = $region37
    $region36: #{tpu_custom_call.1} parent=1 // pred_region
      %113 = dma.done [#allocation5], 128
    $region37: #{tpu_custom_call.1} parent=1 // pred_fallthru
      _
    %114 = vsyncpa [#allocation4], 1
    %115 = vsyncpa [#allocation7], 1
    %116 = vsyncpa [#allocation5], 1

</llo_original>
